<compile_context>
chip_gen: v5e
topology: v5e:2x2
jax: 0.10.0
libtpu: 0.0.40
codegen_flags: <defaults>
</compile_context>

<pallas_src>
import math

import jax
import jax.numpy as jnp
from jax.experimental import pallas as pl
from jax.experimental.pallas import tpu as pltpu

_LANE = 128
# ~4 MiB of payload (both latents) per grid step: the fixed ~0.35 us/step
# overhead is <1% of the HBM transfer time even at v7x's 3.2 TB/s, and the
# double-buffered in+out footprint (~16 MiB) fits every generation once the
# scoped-VMEM limit is raised explicitly below.
_DEFAULT_BLOCK_BYTES = 4 << 20
# Per-buffer VMEM cap so 2x(in+out) double buffers stay well under v7x's
# 64 MiB physical VMEM, even for the sublane-padded ragged-N layout.
_MAX_BLOCK_VMEM_BYTES = 10 << 20


def _round_up(v, m):
    return ((v + m - 1) // m) * m


def _mixing_kernel(p_ref, x_ref, o_ref):
    """p_ref: (1,) f32 in SMEM.  x_ref / o_ref: (2, ...) VMEM tiles."""
    p = p_ref[0]
    q = 1.0 - p
    x0 = x_ref[0:1].astype(jnp.float32)
    x1 = x_ref[1:2].astype(jnp.float32)
    # y0 = p*x0 + (1-p)*x1                                   (EDICT eq. 12)
    y0 = (p * x0 + q * x1).astype(o_ref.dtype)
    o_ref[0:1] = y0
    # y1 = (1-p)*y0 + p*x1                                   (EDICT eq. 13)
    # Computed from the *stored* (dtype-rounded) y0 so bf16/fp16 follow the
    # PyTorch reference's sequential dependency; extra VALU work is free.
    o_ref[1:2] = (q * y0.astype(jnp.float32) + p * x1).astype(o_ref.dtype)


def mixing_layer(x, mix_weight=0.93, *,
                 target_block_bytes=_DEFAULT_BLOCK_BYTES,
                 donate_input=False):
    """Pallas implementation of MixingLayer.forward.

    x: (2, C, H, W) (or any (2, ...)) array, float dtype. Returns same
    shape/dtype. `mix_weight` may be a python float or a traced scalar.
    """
    assert x.shape[0] == 2, "MixingLayer expects exactly two stacked latents"
    orig_shape = x.shape
    dtype = x.dtype
    n = math.prod(orig_shape[1:])
    itemsize = jnp.dtype(dtype).itemsize
    sublane = max(8, 32 // itemsize)  # 8 for f32, 16 for bf16, 32 for int8

    # mix_weight as a tiny f32 SMEM operand (no per-value recompiles).
    p_arr = jnp.asarray(mix_weight, dtype=jnp.float32).reshape((1,))

    if n % _LANE == 0:
        # Dense, fully (sublane, lane)-packed layout: (2, N) -> (2, R, 128).
        r = n // _LANE
        x_in = x.reshape(2, r, _LANE)
        row_bytes = 2 * _LANE * itemsize  # payload bytes per r-row (both latents)
        tile_r = max(1, min(target_block_bytes, _MAX_BLOCK_VMEM_BYTES) // row_bytes)
        if r > sublane:
            # Keep >= 2 grid steps so the "parallel" axis shards across both
            # TensorCores on v7x (neutral on single-TC v5e/v6e).
            tile_r = min(tile_r, _round_up(pl.cdiv(r, 2), sublane))
        if tile_r >= r:
            tile_r = r  # single full-extent block (always legal)
        else:
            tile_r = max(sublane, (tile_r // sublane) * sublane)
        grid = (pl.cdiv(r, tile_r),)  # ragged last block is masked by Pallas
        block = (2, tile_r, _LANE)
        index_map = lambda i: (0, i, 0)
        block_vmem = 2 * tile_r * _LANE * itemsize
        out_shape = jax.ShapeDtypeStruct((2, r, _LANE), dtype)
    else:
        # Ragged N: operate directly on (2, N) with a (2, TILE_N) block.
        # Leading block dim 2 == full extent (legal) and TILE_N is a lane
        # multiple; Pallas masks the ragged last block, so there is NO extra
        # pad/slice HBM pass. The 2-of-8 sublane vreg underutilization is
        # irrelevant because the kernel is HBM-bound with large VALU headroom.
        x_in = x.reshape(2, n)
        pad_rows = sublane  # VMEM sublane padding of the 2-row block
        max_tile = min(target_block_bytes // (2 * itemsize),
                       _MAX_BLOCK_VMEM_BYTES // (pad_rows * itemsize))
        tile_n = max(_LANE, (max_tile // _LANE) * _LANE)
        if n > _LANE:
            tile_n = min(tile_n, _round_up(pl.cdiv(n, 2), _LANE))
        if tile_n >= n:
            tile_n = n  # full-extent block (legal even if not lane aligned)
        grid = (pl.cdiv(n, tile_n),)
        block = (2, tile_n)
        index_map = lambda i: (0, i)
        block_vmem = pad_rows * tile_n * itemsize
        out_shape = jax.ShapeDtypeStruct((2, n), dtype)

    # Explicit scoped-VMEM budget: double buffers for input + output plus
    # margin, clamped so it is legal on every generation (v5e scoped default
    # is only 16 MiB; v7x has 64 MiB physical VMEM per TensorCore).
    vmem_limit = int(min(max(4 * block_vmem + (2 << 20), 32 << 20), 48 << 20))

    # Optional in-place update: input 0 is the SMEM scalar, input 1 is x.
    # Only enable when the caller donates x (e.g. under jit); otherwise XLA
    # inserts a defensive copy that costs an extra HBM pass.
    io_aliases = {1: 0} if donate_input else {}

    out = pl.pallas_call(
        _mixing_kernel,
        out_shape=out_shape,
        grid_spec=pltpu.PrefetchScalarGridSpec(
            num_scalar_prefetch=0,
            grid=grid,
            in_specs=[
                pl.BlockSpec(memory_space=pltpu.MemorySpace.SMEM),  # mix weight
                pl.BlockSpec(block, index_map),                     # stacked latents
            ],
            out_specs=pl.BlockSpec(block, index_map),
            # TODO(synk): only if an xprof trace shows exposed DMA bubbles on
            # v7x, add pipeline_mode=pl.Buffered(3) here and re-budget VMEM.
        ),
        compiler_params=pltpu.CompilerParams(
            dimension_semantics=("parallel",),
            vmem_limit_bytes=vmem_limit,
            # TODO(synk): when embedded in the full model with a fusible
            # elementwise producer of x, set allow_input_fusion so XLA streams
            # the producer straight into this kernel's input read.
        ),
        input_output_aliases=io_aliases,
        cost_estimate=pl.CostEstimate(
            flops=6 * n,
            transcendentals=0,
            bytes_accessed=4 * n * itemsize,  # 2 latents in + 2 latents out
        ),
    )(p_arr, x_in)

    return out.reshape(orig_shape)


def mixing_layer_ref(x, mix_weight=0.93):
    """Pure-JAX reference mirroring the PyTorch forward exactly."""
    p = mix_weight
    x0_in, x1_in = x[:1], x[1:]
    x0 = p * x0_in + (1.0 - p) * x1_in
    x1 = (1.0 - p) * x0 + p * x1_in
    return jnp.concatenate([x0, x1], axis=0)


if __name__ == "__main__":
    # MixingLayer has no learnable parameters (only the scalar mix_weight).
    key = jax.random.PRNGKey(0)
    k0, k1, k2, k3 = jax.random.split(key, 4)

    # Primary small example consistent with the module: (2, C, H, W).
    x = jax.random.normal(k0, (2, 4, 16, 16), dtype=jnp.float32)
    out = jax.block_until_ready(mixing_layer(x, mix_weight=0.93))
    ref = mixing_layer_ref(x, mix_weight=0.93)
    assert out.shape == x.shape and out.dtype == x.dtype
    assert jnp.allclose(out, ref, atol=1e-5, rtol=1e-5)

    # Multi-block aligned path (tiny target block forces grid > 1, ragged
    # last block along the sublane dim).
    x2 = jax.random.normal(k1, (2, 4, 24, 40), dtype=jnp.float32)  # r = 30
    out2 = jax.block_until_ready(
        mixing_layer(x2, mix_weight=0.93, target_block_bytes=16 * 1024))
    assert jnp.allclose(out2, mixing_layer_ref(x2), atol=1e-5, rtol=1e-5)

    # Non-lane-aligned N, single block (handled in-kernel, no pad/slice).
    x3 = jax.random.normal(k2, (2, 3, 5, 7), dtype=jnp.float32)    # n = 105
    out3 = jax.block_until_ready(mixing_layer(x3, mix_weight=0.93))
    assert jnp.allclose(out3, mixing_layer_ref(x3), atol=1e-5, rtol=1e-5)

    # Non-lane-aligned N with multiple lane blocks (ragged last block masked).
    x4 = jax.random.normal(k3, (2, 3, 11, 35), dtype=jnp.float32)  # n = 1155
    out4 = jax.block_until_ready(mixing_layer(x4, mix_weight=0.93))
    assert jnp.allclose(out4, mixing_layer_ref(x4), atol=1e-5, rtol=1e-5)

    # bf16: the kernel keeps the sequential y0 -> y1 dependency through the
    # storage dtype, so it tracks the stepwise reference to a few bf16 ULPs.
    xb = x.astype(jnp.bfloat16)
    outb = jax.block_until_ready(mixing_layer(xb, mix_weight=0.93))
    refb = mixing_layer_ref(xb, mix_weight=0.93)
    assert outb.dtype == jnp.bfloat16
    assert jnp.allclose(outb.astype(jnp.float32), refb.astype(jnp.float32),
                        atol=8e-2, rtol=8e-2)

    # Traced mix_weight (jit argument / learned parameter): no float() crash,
    # no recompile per weight value.
    out_j = jax.block_until_ready(jax.jit(mixing_layer)(x, jnp.float32(0.25)))
    assert jnp.allclose(out_j, mixing_layer_ref(x, 0.25), atol=1e-5, rtol=1e-5)

    print("KERNEL_OK")
</pallas_src>

<mosaic_0001>
module attributes {stable_mosaic.version = 11 : i64} {
  func.func @_mixing_kernel(%arg0: i32, %arg1: memref<1xf32, #tpu.memory_space<smem>>, %arg2: memref<2x8x128xf32, #tpu.memory_space<vmem>>, %arg3: memref<2x8x128xf32, #tpu.memory_space<vmem>>) attributes {dimension_semantics = [#tpu.dimension_semantics<parallel>], iteration_bounds = array<i64: 1>, scalar_prefetch = 0 : i64, scratch_operands = 0 : i64, tpu.core_type = #tpu.core_type<tc>, window_params = [{transform_indices = @transform_0, window_bounds = array<i64: 1>}, {transform_indices = @transform_1, window_bounds = array<i64: 2, 8, 128>}, {transform_indices = @transform_2, window_bounds = array<i64: 2, 8, 128>}]} {
    %c0 = arith.constant 0 : index
    %0 = memref.load %arg1[%c0] : memref<1xf32, #tpu.memory_space<smem>>
    %cst = arith.constant 1.000000e+00 : f32
    %1 = arith.subf %cst, %0 : f32
    %c0_0 = arith.constant 0 : index
    %c0_1 = arith.constant 0 : index
    %c0_2 = arith.constant 0 : index
    %2 = vector.load %arg2[%c0_0, %c0_1, %c0_2] : memref<2x8x128xf32, #tpu.memory_space<vmem>>, vector<1x8x128xf32>
    %c1 = arith.constant 1 : index
    %c0_3 = arith.constant 0 : index
    %c0_4 = arith.constant 0 : index
    %3 = vector.load %arg2[%c1, %c0_3, %c0_4] : memref<2x8x128xf32, #tpu.memory_space<vmem>>, vector<1x8x128xf32>
    %4 = vector.broadcast %0 : f32 to vector<1x8x128xf32>
    %5 = arith.mulf %4, %2 : vector<1x8x128xf32>
    %6 = vector.broadcast %1 : f32 to vector<1x8x128xf32>
    %7 = arith.mulf %6, %3 : vector<1x8x128xf32>
    %8 = arith.addf %5, %7 : vector<1x8x128xf32>
    %c0_5 = arith.constant 0 : index
    %c0_6 = arith.constant 0 : index
    %c0_7 = arith.constant 0 : index
    %9 = vector.load %arg3[%c0_5, %c0_6, %c0_7] : memref<2x8x128xf32, #tpu.memory_space<vmem>>, vector<1x8x128xf32>
    tpu.vector_store %arg3[%c0_5, %c0_6, %c0_7], %8 {strides = array<i32>} : memref<2x8x128xf32, #tpu.memory_space<vmem>>, vector<1x8x128xf32>,
    %10 = vector.broadcast %1 : f32 to vector<1x8x128xf32>
    %11 = arith.mulf %10, %8 : vector<1x8x128xf32>
    %12 = vector.broadcast %0 : f32 to vector<1x8x128xf32>
    %13 = arith.mulf %12, %3 : vector<1x8x128xf32>
    %14 = arith.addf %11, %13 : vector<1x8x128xf32>
    %c1_8 = arith.constant 1 : index
    %c0_9 = arith.constant 0 : index
    %c0_10 = arith.constant 0 : index
    %15 = vector.load %arg3[%c1_8, %c0_9, %c0_10] : memref<2x8x128xf32, #tpu.memory_space<vmem>>, vector<1x8x128xf32>
    tpu.vector_store %arg3[%c1_8, %c0_9, %c0_10], %14 {strides = array<i32>} : memref<2x8x128xf32, #tpu.memory_space<vmem>>, vector<1x8x128xf32>,
    return
  }
  func.func @transform_0(%arg0: i32) -> i32 {
    %c0_i32 = arith.constant 0 : i32
    %c0_i32_0 = arith.constant 0 : i32
    return %c0_i32 : i32
  }
  func.func @transform_1(%arg0: i32) -> (i32, i32, i32) {
    %c0_i32 = arith.constant 0 : i32
    %c0_i32_0 = arith.constant 0 : i32
    %c0_i32_1 = arith.constant 0 : i32
    return %c0_i32, %arg0, %c0_i32_0 : i32, i32, i32
  }
  func.func @transform_2(%arg0: i32) -> (i32, i32, i32) {
    %c0_i32 = arith.constant 0 : i32
    %c0_i32_0 = arith.constant 0 : i32
    %c0_i32_1 = arith.constant 0 : i32
    return %c0_i32, %arg0, %c0_i32_0 : i32, i32, i32
  }
}

</mosaic_0001>

<llo_original>
// kernel: tpu_custom_call.1
$region0: #{tpu_custom_call.1}
  #allocation0 [shape = 'u32[]', space=smem, size = 0x4, offset = 0x4, fixed_abs, tag = 'smem constant byte address 0x4 - core index']
  #allocation1 [shape = 'u32[72,128]{1,0:T(1,128)}', space=vmem, size = 0x9000, scoped, tag = 'internal scratch']
  #allocation2 [shape = 'f32[1]{0:T(128)S(6)}', space=smem, size = 0x200, scoped, tag = 'scoped memory for tpu_custom_call.1']
  %s0 = inlined_call_operand.<no memory space> [shape: f32[1], index: 0, kind: input, shape index: {}]
  %s1 = inlined_call_operand.hbm [shape: f32[2,8,128], index: 1, kind: input, shape index: {}]
  %s2 = inlined_call_operand.hbm [shape: f32[2,8,128], index: 2, kind: output, shape index: {}]
  %s3 = sld [smem:[#allocation0]]
  $region22: #{tpu_custom_call.1} parent=0
    _
  %s5 = ssub.s32 1, %s3
  %s6 = scalar_select 0, %s5, %s3
  %7 = sst [smem:[#allocation2]] %s0
  $region1: #{tpu_custom_call.1} parent=0
    #allocation3 [shape = 'u8[8192]{0}', space=vmem, size = 0x2000, scoped, tag = 'input window, operand 1, single buffered']
    #allocation4 [shape = 's32[1]{0}', space=sflag, size = 0x4, scoped, tag = 'scoped memory for tpu_custom_call.1']
    #allocation5 [shape = 's32[1]{0}', space=sflag, size = 0x4, scoped, tag = 'scoped memory for tpu_custom_call.1']
    #allocation6 [shape = 'u8[8192]{0}', space=vmem, size = 0x2000, scoped, tag = 'output window, operand 0, single buffered']
    %8 = vsyncpa [#allocation4], 0
    %9 = vsyncpa [#allocation5], 0
    // Predicated region
    $region2: #{tpu_custom_call.1} parent=1 // pred_check
      _
    $region3: #{tpu_custom_call.1} parent=1 // pred_check_branch
      %11 = sbr.rel (0) target = $region5
    $region4: #{tpu_custom_call.1} parent=1 // pred_region
      _
    $region5: #{tpu_custom_call.1} parent=1 // pred_fallthru
      _
    // Predicated region
    $region6: #{tpu_custom_call.1} parent=1 // pred_check
      _
    $region7: #{tpu_custom_call.1} parent=1 // pred_check_branch
      %13 = sbr.rel (0) target = $region9
    $region8: #{tpu_custom_call.1} parent=1 // pred_region
      %15 = vsyncadd [#allocation4], 0
      %s16 = sshll.u32 %s1, 4
      %s17 = int_to_ptr.hbm [resolvable:$true] %s16
      %s18 = sshll.u32 [#allocation3], 4
      %s19 = int_to_ptr.vmem [resolvable:$true] %s18
      %24 = dma.hbm_to_vmem [thread:$0]  %s17, 256, %s19, [#allocation4], 128, 128, 8
    $region9: #{tpu_custom_call.1} parent=1 // pred_fallthru
      _
    // Predicated region
    $region10: #{tpu_custom_call.1} parent=1 // pred_check
      _
    $region11: #{tpu_custom_call.1} parent=1 // pred_check_branch
      %26 = sbr.rel (0) target = $region13
    $region12: #{tpu_custom_call.1} parent=1 // pred_region
      %28 = dma.done [#allocation4], 256
    $region13: #{tpu_custom_call.1} parent=1 // pred_fallthru
      _
    %s29 = sld [smem:[#allocation2]]
    %s30 = ssub.f32 1.0, %s29
    %v31 = vld [vmem:[#allocation3] sm:$0xff]
    %s32 = scalar_lea.vmem [#allocation3], 8
    %v33 = vld [vmem:[%s32] sm:$0xff]
    %v34 = vstv %s29
    %v35 = vmul.f32 %v34, %v31
    %v36 = vstv %s30
    %v37 = vmul.f32 %v36, %v33
    %v38 = vadd.f32 %v35, %v37
    %39 = vst [vmem:[#allocation6] sm:$0xff] %v38
    %v40 = vmul.f32 %v36, %v38
    %v41 = vmul.f32 %v34, %v33
    %v42 = vadd.f32 %v40, %v41
    %s43 = scalar_lea.vmem [#allocation6], 8
    %44 = vst [vmem:[%s43] sm:$0xff] %v42
    // Predicated region
    $region14: #{tpu_custom_call.1} parent=1 // pred_check
      _
    $region15: #{tpu_custom_call.1} parent=1 // pred_check_branch
      %46 = sbr.rel (0) target = $region17
    $region16: #{tpu_custom_call.1} parent=1 // pred_region
      %48 = vsyncadd [#allocation5], 0
      %s49 = sshll.u32 [#allocation6], 4
      %s50 = int_to_ptr.vmem [resolvable:$true] %s49
      %s51 = sshll.u32 %s2, 4
      %s52 = int_to_ptr.hbm [resolvable:$true] %s51
      %57 = dma.vmem_to_hbm [thread:$0]  %s50, 256, %s52, [#allocation5], 128, 128, 8
    $region17: #{tpu_custom_call.1} parent=1 // pred_fallthru
      _
    // Predicated region
    $region18: #{tpu_custom_call.1} parent=1 // pred_check
      _
    $region19: #{tpu_custom_call.1} parent=1 // pred_check_branch
      %59 = sbr.rel (0) target = $region21
    $region20: #{tpu_custom_call.1} parent=1 // pred_region
      %61 = dma.done [#allocation5], 256
    $region21: #{tpu_custom_call.1} parent=1 // pred_fallthru
      _
    %62 = vsyncpa [#allocation4], 1
    %63 = vsyncpa [#allocation5], 1

</llo_original>
